<compile_context>
chip_gen: v7x
topology: tpu7x:2x2x1
jax: 0.10.0
libtpu: 0.0.40
codegen_flags: <defaults>
</compile_context>

<pallas_src>
import functools

import jax
import jax.numpy as jnp
from jax.experimental import pallas as pl
from jax.experimental.pallas import tpu as pltpu


def _round_up(n, m):
    return ((n + m - 1) // m) * m


# ----------------------------------------------------------------------------
# Fused kernel: global-average-pool + Linear (+ bias), streamed over channels.
#   x_ref   (tb, tc, HW)  activation slab (NCHW viewed as (N, C, H*W))
#   w_ref   (tc, Opad)    channel slab of W^T, class dim zero-padded to 128
#   b_ref   (1, Opad)     padded bias (resident)
#   o_ref   (tb, Opad)    output
#   acc_ref (tb, Opad)    f32 partial FC output of the spatial *sums*
# ----------------------------------------------------------------------------
def _fc100_kernel(inv_hw, x_ref, w_ref, b_ref, o_ref, acc_ref):
    c = pl.program_id(1)

    @pl.when(c == 0)
    def _():
        acc_ref[...] = jnp.zeros_like(acc_ref)

    x = x_ref[...]
    if x.dtype != jnp.float32:        # no-op for the f32 module
        x = x.astype(jnp.float32)
    pooled_sum = jnp.sum(x, axis=-1)  # (tb, tc) spatial sum, f32
    acc_ref[...] += jnp.dot(pooled_sum, w_ref[...],
                            preferred_element_type=jnp.float32)

    @pl.when(c == pl.num_programs(1) - 1)
    def _():
        # (sum_x @ W) * (1/HW) + b  ==  mean_x @ W + b
        o_ref[...] = (acc_ref[...] * inv_hw + b_ref[...]).astype(o_ref.dtype)


def _vmem_limit_bytes():
    """Per-generation VMEM ceiling (v5e/v6e: 128 MiB, v7x: 64 MiB physical)."""
    cap = 64 << 20  # conservative fallback (v7x-sized) if the query fails
    try:
        cap = int(getattr(pltpu.get_tpu_info(), "vmem_capacity_bytes", cap))
    except Exception:
        pass
    # Leave headroom for compiler-internal scratch; cap well under physical.
    return min(cap * 3 // 4, 80 << 20)


def _choose_tiles(Np, C, HW, Opad, vmem_limit):
    # Batch tile: largest multiple-of-8 divisor of Np, <=128, small enough to
    # give >=2 parallel batch tiles when possible (v7x has 2 TensorCores).
    cap_tb = 128
    if Np >= 16:
        cap_tb = min(cap_tb, Np // 2)
    tb, d = 8, 8
    while d <= cap_tb:
        if Np % d == 0:
            tb = d
        d += 8

    # Channel tile: budget the double-buffered streamed operands (activation
    # slab + weight slab) against the per-generation VMEM limit.
    fixed = (Opad * 4               # bias (resident)
             + tb * Opad * 4        # f32 accumulator scratch
             + 2 * tb * Opad * 4)   # output (double-buffered)
    budget = max(vmem_limit - fixed - (4 << 20), 2 << 20)
    per_channel = 2 * 4 * (tb * HW + Opad)   # 2 buffers, f32 bytes per channel
    tc_max = max(budget // per_channel, 1)
    if C <= tc_max:
        tc = C                       # whole channel dim in one step
    else:
        tc, d = 8, 8
        lim = min(tc_max, C)
        while d <= lim:
            if C % d == 0:
                tc = d
            d += 8
        if C % 8 != 0:
            # TODO(synk): tile + mask odd channel counts instead of falling
            # back to the full channel dim when C is not a multiple of 8.
            tc = C
    return tb, tc


def _fc100_pallas(x_ncl, w_pad, b_pad, *, hw, tb, tc, vmem_limit):
    """x_ncl: (Np, C, HW), w_pad: (C, Opad) f32, b_pad: (1, Opad) f32."""
    Np, C, HW = x_ncl.shape
    Opad = w_pad.shape[1]
    grid = (Np // tb, C // tc)
    kernel = functools.partial(_fc100_kernel, float(1.0 / hw))
    return pl.pallas_call(
        kernel,
        out_shape=jax.ShapeDtypeStruct((Np, Opad), jnp.float32),
        grid_spec=pltpu.PrefetchScalarGridSpec(
            num_scalar_prefetch=0,
            grid=grid,
            in_specs=[
                pl.BlockSpec((tb, tc, HW), lambda i, c: (i, c, 0)),  # activation
                pl.BlockSpec((tc, Opad), lambda i, c: (c, 0)),       # weight slab
                pl.BlockSpec((1, Opad), lambda i, c: (0, 0)),        # bias
            ],
            out_specs=pl.BlockSpec((tb, Opad), lambda i, c: (i, 0)),
            scratch_shapes=[pltpu.VMEM((tb, Opad), jnp.float32)],
        ),
        compiler_params=pltpu.CompilerParams(
            dimension_semantics=("parallel", "arbitrary"),
            vmem_limit_bytes=int(vmem_limit)),
    )(x_ncl, w_pad, b_pad)


@jax.jit
def fc100_forward(x_nchw, weight, bias):
    """x_nchw: (N, C, H, W); weight: (100, C); bias: (100,) -> (N, 100) f32."""
    N, C, H, W = x_nchw.shape
    O = weight.shape[0]
    HW = H * W

    # Free contiguous reshape: no transpose, no dtype cast, no extra HBM pass.
    x = x_nchw.reshape(N, C, HW)

    # Pad batch only to a multiple of 8 (zero copy when already aligned).
    Np = _round_up(N, 8)
    if Np != N:
        x = jnp.pad(x, ((0, Np - N), (0, 0), (0, 0)))

    # Class dim padded to exactly 128: lane-dense unmasked stores.
    Opad = _round_up(O, 128)
    w_pad = jnp.zeros((C, Opad), jnp.float32).at[:, :O].set(
        weight.T.astype(jnp.float32))
    b_pad = jnp.zeros((1, Opad), jnp.float32).at[:, :O].set(
        bias.astype(jnp.float32))

    vmem_limit = _vmem_limit_bytes()
    tb, tc = _choose_tiles(Np, C, HW, Opad, vmem_limit)

    out = _fc100_pallas(x, w_pad, b_pad, hw=HW, tb=tb, tc=tc,
                        vmem_limit=vmem_limit)
    return out[:N, :O]


# ----------------------------------------------------------------------------
# Pure-JAX reference (f32) for a correctness sanity check.
# ----------------------------------------------------------------------------
def reference_forward(x_nchw, weight, bias):
    pooled = jnp.mean(x_nchw, axis=(2, 3))   # (N, C)
    return pooled @ weight.T + bias          # (N, 100)


if __name__ == "__main__":
    key = jax.random.PRNGKey(0)
    kx, kw = jax.random.split(key)

    # Small but module-consistent shapes: batch=4, input_size=64, spatial 8x8.
    N, C, H, W = 4, 64, 8, 8
    x = jax.random.normal(kx, (N, C, H, W), jnp.float32)
    bound = 1.0 / (C ** 0.5)                  # PyTorch Linear default init
    weight = jax.random.uniform(kw, (100, C), jnp.float32, -bound, bound)
    bias = jnp.zeros((100,), jnp.float32)     # the module zeroes the Linear bias

    out = jax.block_until_ready(fc100_forward(x, weight, bias))
    assert out.shape == (N, 100), out.shape

    ref = jax.block_until_ready(reference_forward(x, weight, bias))
    max_err = float(jnp.max(jnp.abs(out - ref)))
    if max_err > 1e-3:
        raise AssertionError(f"mismatch vs reference, max abs err = {max_err}")

    print("KERNEL_OK")
</pallas_src>

<mosaic_0001>
module attributes {stable_mosaic.version = 11 : i64} {
  func.func @_fc100_kernel(%arg0: i32, %arg1: i32, %arg2: memref<8x64x64xf32, #tpu.memory_space<vmem>>, %arg3: memref<64x128xf32, #tpu.memory_space<vmem>>, %arg4: memref<1x128xf32, #tpu.memory_space<vmem>>, %arg5: memref<8x128xf32, #tpu.memory_space<vmem>>, %arg6: memref<8x128xf32, #tpu.memory_space<vmem>>) attributes {dimension_semantics = [#tpu.dimension_semantics<parallel>, #tpu.dimension_semantics<arbitrary>], iteration_bounds = array<i64: 1, 1>, scalar_prefetch = 0 : i64, scratch_operands = 1 : i64, tpu.core_type = #tpu.core_type<tc>, window_params = [{transform_indices = @transform_0, window_bounds = array<i64: 8, 64, 64>}, {transform_indices = @transform_1, window_bounds = array<i64: 64, 128>}, {pipeline_mode = #tpu.pipeline_mode<synchronous>, transform_indices = @transform_2, window_bounds = array<i64: 1, 128>}, {transform_indices = @transform_3, window_bounds = array<i64: 8, 128>}]} {
    %c0_i32 = arith.constant 0 : i32
    %0 = arith.cmpi eq, %arg1, %c0_i32 : i32
    %1 = arith.extui %0 : i1 to i32
    %c0_i32_0 = arith.constant 0 : i32
    %2 = arith.cmpi ne, %1, %c0_i32_0 : i32
    scf.if %2 {
      %cst_12 = arith.constant 0.000000e+00 : f32
      %13 = vector.broadcast %cst_12 : f32 to vector<8x128xf32>
      %c0_13 = arith.constant 0 : index
      %c0_14 = arith.constant 0 : index
      %14 = vector.load %arg6[%c0_13, %c0_14] : memref<8x128xf32, #tpu.memory_space<vmem>>, vector<8x128xf32>
      tpu.vector_store %arg6[%c0_13, %c0_14], %13 {strides = array<i32>} : memref<8x128xf32, #tpu.memory_space<vmem>>, vector<8x128xf32>,
    } else {
    }
    %c0 = arith.constant 0 : index
    %c0_1 = arith.constant 0 : index
    %c0_2 = arith.constant 0 : index
    %3 = vector.load %arg2[%c0, %c0_1, %c0_2] : memref<8x64x64xf32, #tpu.memory_space<vmem>>, vector<8x64x64xf32>
    %cst = arith.constant dense<0.000000e+00> : vector<8x64xf32>
    %4 = vector.multi_reduction <add>, %3, %cst [2] : vector<8x64x64xf32> to vector<8x64xf32>
    %c0_3 = arith.constant 0 : index
    %c0_4 = arith.constant 0 : index
    %5 = vector.load %arg6[%c0_3, %c0_4] : memref<8x128xf32, #tpu.memory_space<vmem>>, vector<8x128xf32>
    %c0_5 = arith.constant 0 : index
    %c0_6 = arith.constant 0 : index
    %6 = vector.load %arg3[%c0_5, %c0_6] : memref<64x128xf32, #tpu.memory_space<vmem>>, vector<64x128xf32>
    %cst_7 = arith.constant dense<0.000000e+00> : vector<8x128xf32>
    %7 = tpu.matmul %4, %6, %cst_7 {dimension_numbers = #tpu.dot_dimension_numbers<[1], [0], [0], [1], [0, 0, 1, 1], [], []>} : vector<8x64xf32>, vector<64x128xf32>, vector<8x128xf32> -> vector<8x128xf32>
    %8 = arith.addf %5, %7 : vector<8x128xf32>
    %c0_8 = arith.constant 0 : index
    %c0_9 = arith.constant 0 : index
    %9 = vector.load %arg6[%c0_8, %c0_9] : memref<8x128xf32, #tpu.memory_space<vmem>>, vector<8x128xf32>
    tpu.vector_store %arg6[%c0_8, %c0_9], %8 {strides = array<i32>} : memref<8x128xf32, #tpu.memory_space<vmem>>, vector<8x128xf32>,
    %c0_i32_10 = arith.constant 0 : i32
    %10 = arith.cmpi eq, %arg1, %c0_i32_10 : i32
    %11 = arith.extui %10 : i1 to i32
    %c0_i32_11 = arith.constant 0 : i32
    %12 = arith.cmpi ne, %11, %c0_i32_11 : i32
    scf.if %12 {
      %c0_12 = arith.constant 0 : index
      %c0_13 = arith.constant 0 : index
      %13 = vector.load %arg6[%c0_12, %c0_13] : memref<8x128xf32, #tpu.memory_space<vmem>>, vector<8x128xf32>
      %cst_14 = arith.constant 1.562500e-02 : f32
      %14 = vector.broadcast %cst_14 : f32 to vector<8x128xf32>
      %15 = arith.mulf %13, %14 : vector<8x128xf32>
      %c0_15 = arith.constant 0 : index
      %c0_16 = arith.constant 0 : index
      %16 = vector.load %arg4[%c0_15, %c0_16] : memref<1x128xf32, #tpu.memory_space<vmem>>, vector<1x128xf32>
      %17 = vector.broadcast %16 : vector<1x128xf32> to vector<8x128xf32>
      %18 = arith.addf %15, %17 : vector<8x128xf32>
      %c0_17 = arith.constant 0 : index
      %c0_18 = arith.constant 0 : index
      %19 = vector.load %arg5[%c0_17, %c0_18] : memref<8x128xf32, #tpu.memory_space<vmem>>, vector<8x128xf32>
      tpu.vector_store %arg5[%c0_17, %c0_18], %18 {strides = array<i32>} : memref<8x128xf32, #tpu.memory_space<vmem>>, vector<8x128xf32>,
    } else {
    }
    return
  }
  func.func @transform_0(%arg0: i32, %arg1: i32) -> (i32, i32, i32) {
    %c0_i32 = arith.constant 0 : i32
    %c0_i32_0 = arith.constant 0 : i32
    return %arg0, %arg1, %c0_i32 : i32, i32, i32
  }
  func.func @transform_1(%arg0: i32, %arg1: i32) -> (i32, i32) {
    %c0_i32 = arith.constant 0 : i32
    %c0_i32_0 = arith.constant 0 : i32
    return %arg1, %c0_i32 : i32, i32
  }
  func.func @transform_2(%arg0: i32, %arg1: i32) -> (i32, i32) {
    %c0_i32 = arith.constant 0 : i32
    %c0_i32_0 = arith.constant 0 : i32
    %c0_i32_1 = arith.constant 0 : i32
    return %c0_i32, %c0_i32_0 : i32, i32
  }
  func.func @transform_3(%arg0: i32, %arg1: i32) -> (i32, i32) {
    %c0_i32 = arith.constant 0 : i32
    %c0_i32_0 = arith.constant 0 : i32
    return %arg0, %c0_i32 : i32, i32
  }
}

</mosaic_0001>

<llo_original>
// kernel: fc100_forward.1
$region0: #{fc100_forward.1}
  #allocation0 [shape = 'u32[]', space=smem, size = 0x4, offset = 0x4, fixed_abs, tag = 'smem constant byte address 0x4 - core index']
  #allocation1 [shape = 'u32[144,128]{1,0:T(1,128)}', space=vmem, size = 0x12000, scoped, tag = 'internal scratch']
  #allocation2 [shape = 'f32[8,128]{1,0:T(8,128)}', space=vmem, size = 0x1000, scoped, tag = 'scratch operand']
  %s0 = inlined_call_operand.vmem [shape: f32[8,64,64], index: 0, kind: input, shape index: {}]
  %s1 = inlined_call_operand.vmem [shape: f32[64,128], index: 1, kind: input, shape index: {}]
  %s2 = inlined_call_operand.vmem [shape: f32[1,128], index: 2, kind: input, shape index: {}]
  %s3 = inlined_call_operand.vmem [shape: f32[8,128], index: 3, kind: output, shape index: {}]
  %s4 = sld [smem:[#allocation0]]
  $region30: #{fc100_forward.1} parent=0
    _
  %s6 = ssub.s32 1, %s4
  %s7 = scalar_select 0, %s6, %s4
  // Predicated region
  $region2: #{fc100_forward.1} parent=0 // pred_check
    _
  $region3: #{fc100_forward.1} parent=0 // pred_check_branch
    %9 = sbr.rel (0) target = $region5
  $region4: #{fc100_forward.1} parent=0 // pred_region
    _
  $region5: #{fc100_forward.1} parent=0 // pred_fallthru
    _
  // Predicated region
  $region6: #{fc100_forward.1} parent=0 // pred_check
    _
  $region7: #{fc100_forward.1} parent=0 // pred_check_branch
    %11 = sbr.rel (0) target = $region9
  $region8: #{fc100_forward.1} parent=0 // pred_region
    _
  $region9: #{fc100_forward.1} parent=0 // pred_fallthru
    _
  // Predicated region
  $region10: #{fc100_forward.1} parent=0 // pred_check
    _
  $region11: #{fc100_forward.1} parent=0 // pred_check_branch
    %13 = sbr.rel (0) target = $region13
  $region12: #{fc100_forward.1} parent=0 // pred_region
    _
  $region13: #{fc100_forward.1} parent=0 // pred_fallthru
    _
  %p14 = scmp.eq.s32.totalorder 0, 0
  // Predicated region
  $region14: #{fc100_forward.1} parent=0 // pred_check
    %p15 = pneg %p14
  $region15: #{fc100_forward.1} parent=0 // pred_check_branch
    %17 = sbr.rel (%p15) target = $region17
  $region16: #{fc100_forward.1} parent=0 // pred_region
    %18 = vst [vmem:[#allocation2] sm:$0xff] 0.0
  $region17: #{fc100_forward.1} parent=0 // pred_fallthru
    _
  %v19 = vld [vmem:[%s0] sm:$0xff]
  %v20 = vld [vmem:[%s0 + $0x8] sm:$0xff]
  %v21 = vld [vmem:[%s0 + $0x10] sm:$0xff]
  %v22 = vld [vmem:[%s0 + $0x18] sm:$0xff]
  %v23 = vld [vmem:[%s0 + $0x20] sm:$0xff]
  %v24 = vld [vmem:[%s0 + $0x28] sm:$0xff]
  %v25 = vld [vmem:[%s0 + $0x30] sm:$0xff]
  %v26 = vld [vmem:[%s0 + $0x38] sm:$0xff]
  %v27 = vld [vmem:[%s0 + $0x40] sm:$0xff]
  %v28 = vld [vmem:[%s0 + $0x48] sm:$0xff]
  %v29 = vld [vmem:[%s0 + $0x50] sm:$0xff]
  %v30 = vld [vmem:[%s0 + $0x58] sm:$0xff]
  %v31 = vld [vmem:[%s0 + $0x60] sm:$0xff]
  %v32 = vld [vmem:[%s0 + $0x68] sm:$0xff]
  %v33 = vld [vmem:[%s0 + $0x70] sm:$0xff]
  %v34 = vld [vmem:[%s0 + $0x78] sm:$0xff]
  %v35 = vld [vmem:[%s0 + $0x80] sm:$0xff]
  %v36 = vld [vmem:[%s0 + $0x88] sm:$0xff]
  %v37 = vld [vmem:[%s0 + $0x90] sm:$0xff]
  %v38 = vld [vmem:[%s0 + $0x98] sm:$0xff]
  %v39 = vld [vmem:[%s0 + $0xa0] sm:$0xff]
  %v40 = vld [vmem:[%s0 + $0xa8] sm:$0xff]
  %v41 = vld [vmem:[%s0 + $0xb0] sm:$0xff]
  %v42 = vld [vmem:[%s0 + $0xb8] sm:$0xff]
  %v43 = vld [vmem:[%s0 + $0xc0] sm:$0xff]
  %v44 = vld [vmem:[%s0 + $0xc8] sm:$0xff]
  %v45 = vld [vmem:[%s0 + $0xd0] sm:$0xff]
  %v46 = vld [vmem:[%s0 + $0xd8] sm:$0xff]
  %v47 = vld [vmem:[%s0 + $0xe0] sm:$0xff]
  %v48 = vld [vmem:[%s0 + $0xe8] sm:$0xff]
  %v49 = vld [vmem:[%s0 + $0xf0] sm:$0xff]
  %v50 = vld [vmem:[%s0 + $0xf8] sm:$0xff]
  %v51 = vld [vmem:[%s0 + $0x100] sm:$0xff]
  %v52 = vld [vmem:[%s0 + $0x108] sm:$0xff]
  %v53 = vld [vmem:[%s0 + $0x110] sm:$0xff]
  %v54 = vld [vmem:[%s0 + $0x118] sm:$0xff]
  %v55 = vld [vmem:[%s0 + $0x120] sm:$0xff]
  %v56 = vld [vmem:[%s0 + $0x128] sm:$0xff]
  %v57 = vld [vmem:[%s0 + $0x130] sm:$0xff]
  %v58 = vld [vmem:[%s0 + $0x138] sm:$0xff]
  %v59 = vld [vmem:[%s0 + $0x140] sm:$0xff]
  %v60 = vld [vmem:[%s0 + $0x148] sm:$0xff]
  %v61 = vld [vmem:[%s0 + $0x150] sm:$0xff]
  %v62 = vld [vmem:[%s0 + $0x158] sm:$0xff]
  %v63 = vld [vmem:[%s0 + $0x160] sm:$0xff]
  %v64 = vld [vmem:[%s0 + $0x168] sm:$0xff]
  %v65 = vld [vmem:[%s0 + $0x170] sm:$0xff]
  %v66 = vld [vmem:[%s0 + $0x178] sm:$0xff]
  %v67 = vld [vmem:[%s0 + $0x180] sm:$0xff]
  %v68 = vld [vmem:[%s0 + $0x188] sm:$0xff]
  %v69 = vld [vmem:[%s0 + $0x190] sm:$0xff]
  %v70 = vld [vmem:[%s0 + $0x198] sm:$0xff]
  %v71 = vld [vmem:[%s0 + $0x1a0] sm:$0xff]
  %v72 = vld [vmem:[%s0 + $0x1a8] sm:$0xff]
  %v73 = vld [vmem:[%s0 + $0x1b0] sm:$0xff]
  %v74 = vld [vmem:[%s0 + $0x1b8] sm:$0xff]
  %v75 = vld [vmem:[%s0 + $0x1c0] sm:$0xff]
  %v76 = vld [vmem:[%s0 + $0x1c8] sm:$0xff]
  %v77 = vld [vmem:[%s0 + $0x1d0] sm:$0xff]
  %v78 = vld [vmem:[%s0 + $0x1d8] sm:$0xff]
  %v79 = vld [vmem:[%s0 + $0x1e0] sm:$0xff]
  %v80 = vld [vmem:[%s0 + $0x1e8] sm:$0xff]
  %v81 = vld [vmem:[%s0 + $0x1f0] sm:$0xff]
  %v82 = vld [vmem:[%s0 + $0x1f8] sm:$0xff]
  %vm83 = vcmask 523264
  %v84 = vsel %vm83, %v19, 0.0
  %85 = vadd.xlane.f32.xlu0 %v84
  %v86 = vpop.xlane.xlu0 %85
  %v87 = vsel %vm83, %v20, 0.0
  %88 = vadd.xlane.f32.xlu0 %v87
  %v89 = vpop.xlane.xlu0 %88
  %v90 = vsel %vm83, %v21, 0.0
  %91 = vadd.xlane.f32.xlu0 %v90
  %v92 = vpop.xlane.xlu0 %91
  %v93 = vsel %vm83, %v22, 0.0
  %94 = vadd.xlane.f32.xlu0 %v93
  %v95 = vpop.xlane.xlu0 %94
  %v96 = vsel %vm83, %v23, 0.0
  %97 = vadd.xlane.f32.xlu0 %v96
  %v98 = vpop.xlane.xlu0 %97
  %v99 = vsel %vm83, %v24, 0.0
  %100 = vadd.xlane.f32.xlu0 %v99
  %v101 = vpop.xlane.xlu0 %100
  %v102 = vsel %vm83, %v25, 0.0
  %103 = vadd.xlane.f32.xlu0 %v102
  %v104 = vpop.xlane.xlu0 %103
  %v105 = vsel %vm83, %v26, 0.0
  %106 = vadd.xlane.f32.xlu0 %v105
  %v107 = vpop.xlane.xlu0 %106
  %v108 = vsel %vm83, %v27, 0.0
  %109 = vadd.xlane.f32.xlu0 %v108
  %v110 = vpop.xlane.xlu0 %109
  %v111 = vsel %vm83, %v28, 0.0
  %112 = vadd.xlane.f32.xlu0 %v111
  %v113 = vpop.xlane.xlu0 %112
  %v114 = vsel %vm83, %v29, 0.0
  %115 = vadd.xlane.f32.xlu0 %v114
  %v116 = vpop.xlane.xlu0 %115
  %v117 = vsel %vm83, %v30, 0.0
  %118 = vadd.xlane.f32.xlu0 %v117
  %v119 = vpop.xlane.xlu0 %118
  %v120 = vsel %vm83, %v31, 0.0
  %121 = vadd.xlane.f32.xlu0 %v120
  %v122 = vpop.xlane.xlu0 %121
  %v123 = vsel %vm83, %v32, 0.0
  %124 = vadd.xlane.f32.xlu0 %v123
  %v125 = vpop.xlane.xlu0 %124
  %v126 = vsel %vm83, %v33, 0.0
  %127 = vadd.xlane.f32.xlu0 %v126
  %v128 = vpop.xlane.xlu0 %127
  %v129 = vsel %vm83, %v34, 0.0
  %130 = vadd.xlane.f32.xlu0 %v129
  %v131 = vpop.xlane.xlu0 %130
  %v132 = vsel %vm83, %v35, 0.0
  %133 = vadd.xlane.f32.xlu0 %v132
  %v134 = vpop.xlane.xlu0 %133
  %v135 = vsel %vm83, %v36, 0.0
  %136 = vadd.xlane.f32.xlu0 %v135
  %v137 = vpop.xlane.xlu0 %136
  %v138 = vsel %vm83, %v37, 0.0
  %139 = vadd.xlane.f32.xlu0 %v138
  %v140 = vpop.xlane.xlu0 %139
  %v141 = vsel %vm83, %v38, 0.0
  %142 = vadd.xlane.f32.xlu0 %v141
  %v143 = vpop.xlane.xlu0 %142
  %v144 = vsel %vm83, %v39, 0.0
  %145 = vadd.xlane.f32.xlu0 %v144
  %v146 = vpop.xlane.xlu0 %145
  %v147 = vsel %vm83, %v40, 0.0
  %148 = vadd.xlane.f32.xlu0 %v147
  %v149 = vpop.xlane.xlu0 %148
  %v150 = vsel %vm83, %v41, 0.0
  %151 = vadd.xlane.f32.xlu0 %v150
  %v152 = vpop.xlane.xlu0 %151
  %v153 = vsel %vm83, %v42, 0.0
  %154 = vadd.xlane.f32.xlu0 %v153
  %v155 = vpop.xlane.xlu0 %154
  %v156 = vsel %vm83, %v43, 0.0
  %157 = vadd.xlane.f32.xlu0 %v156
  %v158 = vpop.xlane.xlu0 %157
  %v159 = vsel %vm83, %v44, 0.0
  %160 = vadd.xlane.f32.xlu0 %v159
  %v161 = vpop.xlane.xlu0 %160
  %v162 = vsel %vm83, %v45, 0.0
  %163 = vadd.xlane.f32.xlu0 %v162
  %v164 = vpop.xlane.xlu0 %163
  %v165 = vsel %vm83, %v46, 0.0
  %166 = vadd.xlane.f32.xlu0 %v165
  %v167 = vpop.xlane.xlu0 %166
  %v168 = vsel %vm83, %v47, 0.0
  %169 = vadd.xlane.f32.xlu0 %v168
  %v170 = vpop.xlane.xlu0 %169
  %v171 = vsel %vm83, %v48, 0.0
  %172 = vadd.xlane.f32.xlu0 %v171
  %v173 = vpop.xlane.xlu0 %172
  %v174 = vsel %vm83, %v49, 0.0
  %175 = vadd.xlane.f32.xlu0 %v174
  %v176 = vpop.xlane.xlu0 %175
  %v177 = vsel %vm83, %v50, 0.0
  %178 = vadd.xlane.f32.xlu0 %v177
  %v179 = vpop.xlane.xlu0 %178
  %v180 = vsel %vm83, %v51, 0.0
  %181 = vadd.xlane.f32.xlu0 %v180
  %v182 = vpop.xlane.xlu0 %181
  %v183 = vsel %vm83, %v52, 0.0
  %184 = vadd.xlane.f32.xlu0 %v183
  %v185 = vpop.xlane.xlu0 %184
  %v186 = vsel %vm83, %v53, 0.0
  %187 = vadd.xlane.f32.xlu0 %v186
  %v188 = vpop.xlane.xlu0 %187
  %v189 = vsel %vm83, %v54, 0.0
  %190 = vadd.xlane.f32.xlu0 %v189
  %v191 = vpop.xlane.xlu0 %190
  %v192 = vsel %vm83, %v55, 0.0
  %193 = vadd.xlane.f32.xlu0 %v192
  %v194 = vpop.xlane.xlu0 %193
  %v195 = vsel %vm83, %v56, 0.0
  %196 = vadd.xlane.f32.xlu0 %v195
  %v197 = vpop.xlane.xlu0 %196
  %v198 = vsel %vm83, %v57, 0.0
  %199 = vadd.xlane.f32.xlu0 %v198
  %v200 = vpop.xlane.xlu0 %199
  %v201 = vsel %vm83, %v58, 0.0
  %202 = vadd.xlane.f32.xlu0 %v201
  %v203 = vpop.xlane.xlu0 %202
  %v204 = vsel %vm83, %v59, 0.0
  %205 = vadd.xlane.f32.xlu0 %v204
  %v206 = vpop.xlane.xlu0 %205
  %v207 = vsel %vm83, %v60, 0.0
  %208 = vadd.xlane.f32.xlu0 %v207
  %v209 = vpop.xlane.xlu0 %208
  %v210 = vsel %vm83, %v61, 0.0
  %211 = vadd.xlane.f32.xlu0 %v210
  %v212 = vpop.xlane.xlu0 %211
  %v213 = vsel %vm83, %v62, 0.0
  %214 = vadd.xlane.f32.xlu0 %v213
  %v215 = vpop.xlane.xlu0 %214
  %v216 = vsel %vm83, %v63, 0.0
  %217 = vadd.xlane.f32.xlu0 %v216
  %v218 = vpop.xlane.xlu0 %217
  %v219 = vsel %vm83, %v64, 0.0
  %220 = vadd.xlane.f32.xlu0 %v219
  %v221 = vpop.xlane.xlu0 %220
  %v222 = vsel %vm83, %v65, 0.0
  %223 = vadd.xlane.f32.xlu0 %v222
  %v224 = vpop.xlane.xlu0 %223
  %v225 = vsel %vm83, %v66, 0.0
  %226 = vadd.xlane.f32.xlu0 %v225
  %v227 = vpop.xlane.xlu0 %226
  %v228 = vsel %vm83, %v67, 0.0
  %229 = vadd.xlane.f32.xlu0 %v228
  %v230 = vpop.xlane.xlu0 %229
  %v231 = vsel %vm83, %v68, 0.0
  %232 = vadd.xlane.f32.xlu0 %v231
  %v233 = vpop.xlane.xlu0 %232
  %v234 = vsel %vm83, %v69, 0.0
  %235 = vadd.xlane.f32.xlu0 %v234
  %v236 = vpop.xlane.xlu0 %235
  %v237 = vsel %vm83, %v70, 0.0
  %238 = vadd.xlane.f32.xlu0 %v237
  %v239 = vpop.xlane.xlu0 %238
  %v240 = vsel %vm83, %v71, 0.0
  %241 = vadd.xlane.f32.xlu0 %v240
  %v242 = vpop.xlane.xlu0 %241
  %v243 = vsel %vm83, %v72, 0.0
  %244 = vadd.xlane.f32.xlu0 %v243
  %v245 = vpop.xlane.xlu0 %244
  %v246 = vsel %vm83, %v73, 0.0
  %247 = vadd.xlane.f32.xlu0 %v246
  %v248 = vpop.xlane.xlu0 %247
  %v249 = vsel %vm83, %v74, 0.0
  %250 = vadd.xlane.f32.xlu0 %v249
  %v251 = vpop.xlane.xlu0 %250
  %v252 = vsel %vm83, %v75, 0.0
  %253 = vadd.xlane.f32.xlu0 %v252
  %v254 = vpop.xlane.xlu0 %253
  %v255 = vsel %vm83, %v76, 0.0
  %256 = vadd.xlane.f32.xlu0 %v255
  %v257 = vpop.xlane.xlu0 %256
  %v258 = vsel %vm83, %v77, 0.0
  %259 = vadd.xlane.f32.xlu0 %v258
  %v260 = vpop.xlane.xlu0 %259
  %v261 = vsel %vm83, %v78, 0.0
  %262 = vadd.xlane.f32.xlu0 %v261
  %v263 = vpop.xlane.xlu0 %262
  %v264 = vsel %vm83, %v79, 0.0
  %265 = vadd.xlane.f32.xlu0 %v264
  %v266 = vpop.xlane.xlu0 %265
  %v267 = vsel %vm83, %v80, 0.0
  %268 = vadd.xlane.f32.xlu0 %v267
  %v269 = vpop.xlane.xlu0 %268
  %v270 = vsel %vm83, %v81, 0.0
  %271 = vadd.xlane.f32.xlu0 %v270
  %v272 = vpop.xlane.xlu0 %271
  %v273 = vsel %vm83, %v82, 0.0
  %274 = vadd.xlane.f32.xlu0 %v273
  %v275 = vpop.xlane.xlu0 %274
  %v276 = vld [vmem:[#allocation2] sm:$0xff]
  %v277 = vld [vmem:[%s1] sm:$0xff]
  %v278 = vld [vmem:[%s1 + $0x8] sm:$0xff]
  %v279 = vld [vmem:[%s1 + $0x10] sm:$0xff]
  %v280 = vld [vmem:[%s1 + $0x18] sm:$0xff]
  %v281 = vld [vmem:[%s1 + $0x20] sm:$0xff]
  %v282 = vld [vmem:[%s1 + $0x28] sm:$0xff]
  %v283 = vld [vmem:[%s1 + $0x30] sm:$0xff]
  %v284 = vld [vmem:[%s1 + $0x38] sm:$0xff]
  %v349 = vlaneseq
  %v350 = vand.u32 %v349, 127
  %v351 = vlaneseq
  %v352 = vshrl.u32 %v351, 7
  %v353 = vsub.s32 %v350, %v352
  %v354 = vrot.slane %v86, %v353
  %v355 = vadd.s32 %v350, 4294967288
  %v356 = vlaneseq
  %v357 = vshrl.u32 %v356, 7
  %v358 = vsub.s32 %v355, %v357
  %v359 = vrot.slane %v89, %v358
  %vm360 = vcmask 130112
  %v361 = vsel %vm360, %v359, %v354
  %v362 = vadd.s32 %v350, 4294967280
  %v363 = vlaneseq
  %v364 = vshrl.u32 %v363, 7
  %v365 = vsub.s32 %v362, %v364
  %v366 = vrot.slane %v92, %v365
  %vm367 = vcmask 195712
  %v368 = vsel %vm367, %v366, %v361
  %v369 = vadd.s32 %v350, 4294967272
  %v370 = vlaneseq
  %v371 = vshrl.u32 %v370, 7
  %v372 = vsub.s32 %v369, %v371
  %v373 = vrot.slane %v95, %v372
  %vm374 = vcmask 261312
  %v375 = vsel %vm374, %v373, %v368
  %v376 = vadd.s32 %v350, 4294967264
  %v377 = vlaneseq
  %v378 = vshrl.u32 %v377, 7
  %v379 = vsub.s32 %v376, %v378
  %v380 = vrot.slane %v98, %v379
  %vm381 = vcmask 326912
  %v382 = vsel %vm381, %v380, %v375
  %v383 = vadd.s32 %v350, 4294967256
  %v384 = vlaneseq
  %v385 = vshrl.u32 %v384, 7
  %v386 = vsub.s32 %v383, %v385
  %v387 = vrot.slane %v101, %v386
  %vm388 = vcmask 392512
  %v389 = vsel %vm388, %v387, %v382
  %v390 = vadd.s32 %v350, 4294967248
  %v391 = vlaneseq
  %v392 = vshrl.u32 %v391, 7
  %v393 = vsub.s32 %v390, %v392
  %v394 = vrot.slane %v104, %v393
  %vm395 = vcmask 458112
  %v396 = vsel %vm395, %v394, %v389
  %v397 = vadd.s32 %v350, 4294967240
  %v398 = vlaneseq
  %v399 = vshrl.u32 %v398, 7
  %v400 = vsub.s32 %v397, %v399
  %v401 = vrot.slane %v107, %v400
  %vm402 = vcmask 523712
  %v403 = vsel %vm402, %v401, %v396
  %v404 = vlaneseq
  %v405 = vshrl.u32 %v404, 7
  %v406 = vsub.s32 %v350, %v405
  %v407 = vrot.slane %v110, %v406
  %v408 = vlaneseq
  %v409 = vshrl.u32 %v408, 7
  %v410 = vsub.s32 %v355, %v409
  %v411 = vrot.slane %v113, %v410
  %v412 = vsel %vm360, %v411, %v407
  %v413 = vlaneseq
  %v414 = vshrl.u32 %v413, 7
  %v415 = vsub.s32 %v362, %v414
  %v416 = vrot.slane %v116, %v415
  %v417 = vsel %vm367, %v416, %v412
  %v418 = vlaneseq
  %v419 = vshrl.u32 %v418, 7
  %v420 = vsub.s32 %v369, %v419
  %v421 = vrot.slane %v119, %v420
  %v422 = vsel %vm374, %v421, %v417
  %v423 = vlaneseq
  %v424 = vshrl.u32 %v423, 7
  %v425 = vsub.s32 %v376, %v424
  %v426 = vrot.slane %v122, %v425
  %v427 = vsel %vm381, %v426, %v422
  %v428 = vlaneseq
  %v429 = vshrl.u32 %v428, 7
  %v430 = vsub.s32 %v383, %v429
  %v431 = vrot.slane %v125, %v430
  %v432 = vsel %vm388, %v431, %v427
  %v433 = vlaneseq
  %v434 = vshrl.u32 %v433, 7
  %v435 = vsub.s32 %v390, %v434
  %v436 = vrot.slane %v128, %v435
  %v437 = vsel %vm395, %v436, %v432
  %v438 = vlaneseq
  %v439 = vshrl.u32 %v438, 7
  %v440 = vsub.s32 %v397, %v439
  %v441 = vrot.slane %v131, %v440
  %v442 = vsel %vm402, %v441, %v437
  %v443 = vlaneseq
  %v444 = vshrl.u32 %v443, 7
  %v445 = vsub.s32 %v350, %v444
  %v446 = vrot.slane %v134, %v445
  %v447 = vlaneseq
  %v448 = vshrl.u32 %v447, 7
  %v449 = vsub.s32 %v355, %v448
  %v450 = vrot.slane %v137, %v449
  %v451 = vsel %vm360, %v450, %v446
  %v452 = vlaneseq
  %v453 = vshrl.u32 %v452, 7
  %v454 = vsub.s32 %v362, %v453
  %v455 = vrot.slane %v140, %v454
  %v456 = vsel %vm367, %v455, %v451
  %v457 = vlaneseq
  %v458 = vshrl.u32 %v457, 7
  %v459 = vsub.s32 %v369, %v458
  %v460 = vrot.slane %v143, %v459
  %v461 = vsel %vm374, %v460, %v456
  %v462 = vlaneseq
  %v463 = vshrl.u32 %v462, 7
  %v464 = vsub.s32 %v376, %v463
  %v465 = vrot.slane %v146, %v464
  %v466 = vsel %vm381, %v465, %v461
  %v467 = vlaneseq
  %v468 = vshrl.u32 %v467, 7
  %v469 = vsub.s32 %v383, %v468
  %v470 = vrot.slane %v149, %v469
  %v471 = vsel %vm388, %v470, %v466
  %v472 = vlaneseq
  %v473 = vshrl.u32 %v472, 7
  %v474 = vsub.s32 %v390, %v473
  %v475 = vrot.slane %v152, %v474
  %v476 = vsel %vm395, %v475, %v471
  %v477 = vlaneseq
  %v478 = vshrl.u32 %v477, 7
  %v479 = vsub.s32 %v397, %v478
  %v480 = vrot.slane %v155, %v479
  %v481 = vsel %vm402, %v480, %v476
  %v482 = vlaneseq
  %v483 = vshrl.u32 %v482, 7
  %v484 = vsub.s32 %v350, %v483
  %v485 = vrot.slane %v158, %v484
  %v486 = vlaneseq
  %v487 = vshrl.u32 %v486, 7
  %v488 = vsub.s32 %v355, %v487
  %v489 = vrot.slane %v161, %v488
  %v490 = vsel %vm360, %v489, %v485
  %v491 = vlaneseq
  %v492 = vshrl.u32 %v491, 7
  %v493 = vsub.s32 %v362, %v492
  %v494 = vrot.slane %v164, %v493
  %v495 = vsel %vm367, %v494, %v490
  %v496 = vlaneseq
  %v497 = vshrl.u32 %v496, 7
  %v498 = vsub.s32 %v369, %v497
  %v499 = vrot.slane %v167, %v498
  %v500 = vsel %vm374, %v499, %v495
  %v501 = vlaneseq
  %v502 = vshrl.u32 %v501, 7
  %v503 = vsub.s32 %v376, %v502
  %v504 = vrot.slane %v170, %v503
  %v505 = vsel %vm381, %v504, %v500
  %v506 = vlaneseq
  %v507 = vshrl.u32 %v506, 7
  %v508 = vsub.s32 %v383, %v507
  %v509 = vrot.slane %v173, %v508
  %v510 = vsel %vm388, %v509, %v505
  %v511 = vlaneseq
  %v512 = vshrl.u32 %v511, 7
  %v513 = vsub.s32 %v390, %v512
  %v514 = vrot.slane %v176, %v513
  %v515 = vsel %vm395, %v514, %v510
  %v516 = vlaneseq
  %v517 = vshrl.u32 %v516, 7
  %v518 = vsub.s32 %v397, %v517
  %v519 = vrot.slane %v179, %v518
  %v520 = vsel %vm402, %v519, %v515
  %v521 = vlaneseq
  %v522 = vshrl.u32 %v521, 7
  %v523 = vsub.s32 %v350, %v522
  %v524 = vrot.slane %v182, %v523
  %v525 = vlaneseq
  %v526 = vshrl.u32 %v525, 7
  %v527 = vsub.s32 %v355, %v526
  %v528 = vrot.slane %v185, %v527
  %v529 = vsel %vm360, %v528, %v524
  %v530 = vlaneseq
  %v531 = vshrl.u32 %v530, 7
  %v532 = vsub.s32 %v362, %v531
  %v533 = vrot.slane %v188, %v532
  %v534 = vsel %vm367, %v533, %v529
  %v535 = vlaneseq
  %v536 = vshrl.u32 %v535, 7
  %v537 = vsub.s32 %v369, %v536
  %v538 = vrot.slane %v191, %v537
  %v539 = vsel %vm374, %v538, %v534
  %v540 = vlaneseq
  %v541 = vshrl.u32 %v540, 7
  %v542 = vsub.s32 %v376, %v541
  %v543 = vrot.slane %v194, %v542
  %v544 = vsel %vm381, %v543, %v539
  %v545 = vlaneseq
  %v546 = vshrl.u32 %v545, 7
  %v547 = vsub.s32 %v383, %v546
  %v548 = vrot.slane %v197, %v547
  %v549 = vsel %vm388, %v548, %v544
  %v550 = vlaneseq
  %v551 = vshrl.u32 %v550, 7
  %v552 = vsub.s32 %v390, %v551
  %v553 = vrot.slane %v200, %v552
  %v554 = vsel %vm395, %v553, %v549
  %v555 = vlaneseq
  %v556 = vshrl.u32 %v555, 7
  %v557 = vsub.s32 %v397, %v556
  %v558 = vrot.slane %v203, %v557
  %v559 = vsel %vm402, %v558, %v554
  %v560 = vlaneseq
  %v561 = vshrl.u32 %v560, 7
  %v562 = vsub.s32 %v350, %v561
  %v563 = vrot.slane %v206, %v562
  %v564 = vlaneseq
  %v565 = vshrl.u32 %v564, 7
  %v566 = vsub.s32 %v355, %v565
  %v567 = vrot.slane %v209, %v566
  %v568 = vsel %vm360, %v567, %v563
  %v569 = vlaneseq
  %v570 = vshrl.u32 %v569, 7
  %v571 = vsub.s32 %v362, %v570
  %v572 = vrot.slane %v212, %v571
  %v573 = vsel %vm367, %v572, %v568
  %v574 = vlaneseq
  %v575 = vshrl.u32 %v574, 7
  %v576 = vsub.s32 %v369, %v575
  %v577 = vrot.slane %v215, %v576
  %v578 = vsel %vm374, %v577, %v573
  %v579 = vlaneseq
  %v580 = vshrl.u32 %v579, 7
  %v581 = vsub.s32 %v376, %v580
  %v582 = vrot.slane %v218, %v581
  %v583 = vsel %vm381, %v582, %v578
  %v584 = vlaneseq
  %v585 = vshrl.u32 %v584, 7
  %v586 = vsub.s32 %v383, %v585
  %v587 = vrot.slane %v221, %v586
  %v588 = vsel %vm388, %v587, %v583
  %v589 = vlaneseq
  %v590 = vshrl.u32 %v589, 7
  %v591 = vsub.s32 %v390, %v590
  %v592 = vrot.slane %v224, %v591
  %v593 = vsel %vm395, %v592, %v588
  %v594 = vlaneseq
  %v595 = vshrl.u32 %v594, 7
  %v596 = vsub.s32 %v397, %v595
  %v597 = vrot.slane %v227, %v596
  %v598 = vsel %vm402, %v597, %v593
  %v599 = vlaneseq
  %v600 = vshrl.u32 %v599, 7
  %v601 = vsub.s32 %v350, %v600
  %v602 = vrot.slane %v230, %v601
  %v603 = vlaneseq
  %v604 = vshrl.u32 %v603, 7
  %v605 = vsub.s32 %v355, %v604
  %v606 = vrot.slane %v233, %v605
  %v607 = vsel %vm360, %v606, %v602
  %v608 = vlaneseq
  %v609 = vshrl.u32 %v608, 7
  %v610 = vsub.s32 %v362, %v609
  %v611 = vrot.slane %v236, %v610
  %v612 = vsel %vm367, %v611, %v607
  %v613 = vlaneseq
  %v614 = vshrl.u32 %v613, 7
  %v615 = vsub.s32 %v369, %v614
  %v616 = vrot.slane %v239, %v615
  %v617 = vsel %vm374, %v616, %v612
  %v618 = vlaneseq
  %v619 = vshrl.u32 %v618, 7
  %v620 = vsub.s32 %v376, %v619
  %v621 = vrot.slane %v242, %v620
  %v622 = vsel %vm381, %v621, %v617
  %v623 = vlaneseq
  %v624 = vshrl.u32 %v623, 7
  %v625 = vsub.s32 %v383, %v624
  %v626 = vrot.slane %v245, %v625
  %v627 = vsel %vm388, %v626, %v622
  %v628 = vlaneseq
  %v629 = vshrl.u32 %v628, 7
  %v630 = vsub.s32 %v390, %v629
  %v631 = vrot.slane %v248, %v630
  %v632 = vsel %vm395, %v631, %v627
  %v633 = vlaneseq
  %v634 = vshrl.u32 %v633, 7
  %v635 = vsub.s32 %v397, %v634
  %v636 = vrot.slane %v251, %v635
  %v637 = vsel %vm402, %v636, %v632
  %v638 = vlaneseq
  %v639 = vshrl.u32 %v638, 7
  %v640 = vsub.s32 %v350, %v639
  %v641 = vrot.slane %v254, %v640
  %v642 = vlaneseq
  %v643 = vshrl.u32 %v642, 7
  %v644 = vsub.s32 %v355, %v643
  %v645 = vrot.slane %v257, %v644
  %v646 = vsel %vm360, %v645, %v641
  %v647 = vlaneseq
  %v648 = vshrl.u32 %v647, 7
  %v649 = vsub.s32 %v362, %v648
  %v650 = vrot.slane %v260, %v649
  %v651 = vsel %vm367, %v650, %v646
  %v652 = vlaneseq
  %v653 = vshrl.u32 %v652, 7
  %v654 = vsub.s32 %v369, %v653
  %v655 = vrot.slane %v263, %v654
  %v656 = vsel %vm374, %v655, %v651
  %v657 = vlaneseq
  %v658 = vshrl.u32 %v657, 7
  %v659 = vsub.s32 %v376, %v658
  %v660 = vrot.slane %v266, %v659
  %v661 = vsel %vm381, %v660, %v656
  %v662 = vlaneseq
  %v663 = vshrl.u32 %v662, 7
  %v664 = vsub.s32 %v383, %v663
  %v665 = vrot.slane %v269, %v664
  %v666 = vsel %vm388, %v665, %v661
  %v667 = vlaneseq
  %v668 = vshrl.u32 %v667, 7
  %v669 = vsub.s32 %v390, %v668
  %v670 = vrot.slane %v272, %v669
  %v671 = vsel %vm395, %v670, %v666
  %v672 = vlaneseq
  %v673 = vshrl.u32 %v672, 7
  %v674 = vsub.s32 %v397, %v673
  %v675 = vrot.slane %v275, %v674
  %v676 = vsel %vm402, %v675, %v671
  %vm677 = vcmask 1041409
  %v678 = vsel %vm677, %v442, %v403
  %vm679 = vcmask 1042434
  %v680 = vsel %vm679, %v481, %v678
  %vm681 = vcmask 1043459
  %v682 = vsel %vm681, %v520, %v680
  %vm683 = vcmask 1044484
  %v684 = vsel %vm683, %v559, %v682
  %vm685 = vcmask 1045509
  %v686 = vsel %vm685, %v598, %v684
  %vm687 = vcmask 1046534
  %v688 = vsel %vm687, %v637, %v686
  %vm689 = vcmask 1047559
  %v690 = vsel %vm689, %v676, %v688
  %v691 = vsel %vm83, %v690, 0
  %693 = vmatprep.subr.mxu0 0.0
  %694 = vmatpush1.msra.mxu0 %v277
  %695 = vmatprep.subr.mxu0 0.0
  %696 = vmatpush1.msra.mxu0 %v278
  %697 = vmatprep.subr.mxu0 0.0
  %698 = vmatpush1.msra.mxu0 %v279
  %699 = vmatprep.subr.mxu0 0.0
  %700 = vmatpush1.msra.mxu0 %v280
  %701 = vmatprep.subr.mxu0 0.0
  %702 = vmatpush1.msra.mxu0 %v281
  %703 = vmatprep.subr.mxu0 0.0
  %704 = vmatpush1.msra.mxu0 %v282
  %705 = vmatprep.subr.mxu0 0.0
  %706 = vmatpush1.msra.mxu0 %v283
  %707 = vmatprep.subr.mxu0 0.0
  %708 = vmatpush1.msra.mxu0 %v284
  %709 = vmatprep.subr.mxu0 0.0
  %710 = vmatpush1.msra.mxu0 0.0
  %711 = vmatprep.subr.mxu0 0.0
  %712 = vmatpush1.msra.mxu0 0.0
  %713 = vmatprep.subr.mxu0 0.0
  %714 = vmatpush1.msra.mxu0 0.0
  %715 = vmatprep.subr.mxu0 0.0
  %716 = vmatpush1.msra.mxu0 0.0
  %717 = vmatprep.subr.mxu0 0.0
  %718 = vmatpush1.msra.mxu0 0.0
  %719 = vmatprep.subr.mxu0 0.0
  %720 = vmatpush1.msra.mxu0 0.0
  %721 = vmatprep.subr.mxu0 0.0
  %722 = vmatpush1.msra.mxu0 0.0
  %723 = vmatprep.subr.mxu0 0.0
  %724 = vmatpush1.msra.mxu0 0.0
  %725 = vmatprep.subr.mxu0 0.0
  %726 = vmatpush1.msra.mxu0 0.0
  %727 = vmatprep.subr.mxu0 0.0
  %728 = vmatpush1.msra.mxu0 0.0
  %729 = vmatprep.subr.mxu0 0.0
  %730 = vmatpush1.msra.mxu0 0.0
  %731 = vmatprep.subr.mxu0 0.0
  %732 = vmatpush1.msra.mxu0 0.0
  %733 = vmatprep.subr.mxu0 0.0
  %734 = vmatpush1.msra.mxu0 0.0
  %735 = vmatprep.subr.mxu0 0.0
  %736 = vmatpush1.msra.mxu0 0.0
  %737 = vmatprep.subr.mxu0 0.0
  %738 = vmatpush1.msra.mxu0 0.0
  %739 = vmatprep.subr.mxu0 0.0
  %740 = vmatpush1.msra.mxu0 0.0
  %741 = vmatprep.subr.mxu0 0.0
  %742 = vmatpush1.msra.mxu0 0.0
  %743 = vmatprep.subr.mxu0 0.0
  %744 = vmatpush1.msra.mxu0 0.0
  %745 = vmatprep.subr.mxu0 0.0
  %746 = vmatpush1.msra.mxu0 0.0
  %747 = vmatprep.subr.mxu0 0.0
  %748 = vmatpush1.msra.mxu0 0.0
  %749 = vmatprep.subr.mxu0 0.0
  %750 = vmatpush1.msra.mxu0 0.0
  %751 = vmatprep.subr.mxu0 0.0
  %752 = vmatpush1.msra.mxu0 0.0
  %753 = vmatprep.subr.mxu0 0.0
  %754 = vmatpush1.msra.mxu0 0.0
  %755 = vmatprep.subr.mxu0 0.0
  %756 = vmatpush1.msra.mxu0 0.0
  %757 = vmatprep.mubr.f32.mxu0 0.0
  %758 = vmatmul.mubr.f32.gmra.mrb[0].mxu0 %v691
  %v759 = vpop.f32.mrb[0].mxu0
  %v760 = vadd.f32 0.0, %v759
  %v761 = vpop.f32.mrb[0].mxu0
  %762 = vdwg.mxu0
  %v763 = vadd.f32 %v276, %v760
  %764 = vst [vmem:[#allocation2] sm:$0xff] %v763
  // Predicated region
  $region18: #{fc100_forward.1} parent=0 // pred_check
    %p765 = pneg %p14
  $region19: #{fc100_forward.1} parent=0 // pred_check_branch
    %767 = sbr.rel (%p765) target = $region21
  $region20: #{fc100_forward.1} parent=0 // pred_region
    %v768 = vld [vmem:[#allocation2] sm:$0xff]
    %v769 = vmul.f32 %v768, 0.015625
    %v770 = vld [vmem:[%s2] sm:$0x1]
    %v772 = vlaneseq
    %v773 = vshrl.u32 %v772, 7
    %v774 = vsub.s32 0, %v773
    %v775 = vrot.slane %v770, %v774
    %v777 = vadd.f32 %v769, %v775
    %778 = vst [vmem:[%s3] sm:$0xff] %v777
  $region21: #{fc100_forward.1} parent=0 // pred_fallthru
    _
  // Predicated region
  $region22: #{fc100_forward.1} parent=0 // pred_check
    _
  $region23: #{fc100_forward.1} parent=0 // pred_check_branch
    %780 = sbr.rel (0) target = $region25
  $region24: #{fc100_forward.1} parent=0 // pred_region
    _
  $region25: #{fc100_forward.1} parent=0 // pred_fallthru
    _
  // Predicated region
  $region26: #{fc100_forward.1} parent=0 // pred_check
    _
  $region27: #{fc100_forward.1} parent=0 // pred_check_branch
    %782 = sbr.rel (0) target = $region29
  $region28: #{fc100_forward.1} parent=0 // pred_region
    _
  $region29: #{fc100_forward.1} parent=0 // pred_fallthru
    _

</llo_original>
